<compile_context>
chip_gen: v7x
topology: tpu7x:2x2x1
jax: 0.10.0
libtpu: 0.0.40
codegen_flags: <defaults>
</compile_context>

<pallas_src>
import jax
import jax.numpy as jnp
from jax.experimental import pallas as pl
from jax.experimental.pallas import tpu as pltpu


# ----------------------------------------------------------------------------- kernels


def _illum_kernel_stream(pred_ref, src_ref, out_ref, num_ref, den_ref, scale_ref):
    """Two-phase kernel; phase 1 re-streams predict (used when the p-cache can't fit)."""
    ph = pl.program_id(1)   # 0 = reduce phase, 1 = scale phase
    t = pl.program_id(2)    # tile index within the sample

    @pl.when(jnp.logical_and(ph == 0, t == 0))
    def _():
        num_ref[...] = jnp.zeros_like(num_ref)
        den_ref[...] = jnp.zeros_like(den_ref)
        # Cheap insurance: the output block stays resident (index frozen) during
        # phase 0; keep it defined even if the runtime ever flushes per-step.
        out_ref[...] = jnp.zeros_like(out_ref)

    # clip(predict) is needed in both phases; reductions in f32.
    p = jnp.clip(pred_ref[...].astype(jnp.float32), 0.0, 1.0)

    @pl.when(ph == 0)
    def _():
        s = src_ref[...].astype(jnp.float32)
        pm = jnp.where(s != 1.0, p, 0.0)          # single select, reused twice
        num_ref[...] += jnp.sum(pm * s)
        den_ref[...] += jnp.sum(pm * p)

    @pl.when(jnp.logical_and(ph == 1, t == 0))
    def _():
        # Matches torch semantics: no guard for den == 0 (produces inf/nan).
        scale_ref[...] = num_ref[...] / den_ref[...]

    @pl.when(ph == 1)
    def _():
        out_ref[...] = (scale_ref[...] * p).astype(out_ref.dtype)


def _illum_kernel_cached(pred_ref, src_ref, out_ref, num_ref, den_ref, scale_ref,
                         pcache_ref):
    """Two-phase kernel with a VMEM-resident clip(p) cache: predict is read from HBM
    exactly once per sample (its index_map is frozen during phase 1)."""
    ph = pl.program_id(1)
    t = pl.program_id(2)

    @pl.when(jnp.logical_and(ph == 0, t == 0))
    def _():
        num_ref[...] = jnp.zeros_like(num_ref)
        den_ref[...] = jnp.zeros_like(den_ref)
        out_ref[...] = jnp.zeros_like(out_ref)

    @pl.when(ph == 0)
    def _():
        p = jnp.clip(pred_ref[...].astype(jnp.float32), 0.0, 1.0)
        s = src_ref[...].astype(jnp.float32)
        pm = jnp.where(s != 1.0, p, 0.0)
        num_ref[...] += jnp.sum(pm * s)
        den_ref[...] += jnp.sum(pm * p)
        pcache_ref[pl.ds(t, 1)] = p.astype(pcache_ref.dtype)

    @pl.when(jnp.logical_and(ph == 1, t == 0))
    def _():
        scale_ref[...] = num_ref[...] / den_ref[...]

    @pl.when(ph == 1)
    def _():
        p = pcache_ref[pl.ds(t, 1)].astype(jnp.float32)
        out_ref[...] = (scale_ref[...] * p).astype(out_ref.dtype)


# ----------------------------------------------------------------------- tiling search


def _round_up(x, m):
    return ((x + m - 1) // m) * m


def _row_align_for(dtype):
    bits = jnp.dtype(dtype).itemsize * 8
    if bits >= 32:
        return 8
    if bits == 16:
        return 16
    return 32


def _select_exact_tiling(L, itemsize, row_align, tile_bytes, max_lanes):
    """Find (lanes, rows, block_rows) with rows * lanes == L (no padding), lanes a
    multiple of 128, and block_rows an aligned divisor of rows (or the full dim)."""
    best = None  # (tile_elems, lanes, rows, block_rows)
    max_lanes = max(128, (max_lanes // 128) * 128)
    for lanes in range(128, min(max_lanes, L) + 1, 128):
        if L % lanes:
            continue
        rows = L // lanes
        cap_rows = max(row_align,
                       (tile_bytes // (lanes * itemsize)) // row_align * row_align)
        block_rows = None
        cand = min(cap_rows, (rows // row_align) * row_align)
        while cand >= row_align:
            if rows % cand == 0:
                block_rows = cand
                break
            cand -= row_align
        if block_rows is None:
            # Single full-height block is always legal; only take it if it stays small
            # enough that double-buffered streams fit every generation's VMEM.
            if rows * lanes * itemsize <= 2 * tile_bytes:
                block_rows = rows
            else:
                continue
        key = (block_rows * lanes, lanes)
        if best is None or key > best[:2]:
            best = (block_rows * lanes, lanes, rows, block_rows)
    if best is None:
        return None
    _, lanes, rows, block_rows = best
    return lanes, rows, block_rows


def _select_padded_tiling(L, itemsize, row_align, tile_bytes):
    """Fallback for ragged L: lanes = 128, rows padded up to a block_rows multiple."""
    lanes = 128
    rows = -(-L // lanes)
    cap_rows = max(row_align,
                   (tile_bytes // (lanes * itemsize)) // row_align * row_align)
    block_rows = min(cap_rows, _round_up(rows, row_align))
    rows_pad = _round_up(rows, block_rows)
    return lanes, rows_pad, block_rows


# ----------------------------------------------------------------------------- wrapper


def illuminance_correct(predict, source, *, tile_bytes=4 << 20, max_lanes=2048,
                        use_p_cache=None, p_cache_dtype=None, vmem_cap_bytes=None):
    """Equivalent of IlluminanceCorrect.forward(predict, source).

    predict: (N, C, H, W)
    source : (N, C, H, W) or (1, C, H, W) (broadcast over batch, as in PyTorch).

    use_p_cache: None = auto (cache clip(p) in VMEM when it fits), False = never.
    p_cache_dtype: force the cache dtype (e.g. jnp.bfloat16); None = auto (f32 > bf16).
    """
    N, C, H, W = predict.shape
    Ns = source.shape[0]
    assert source.shape[1:] == (C, H, W)
    assert Ns in (N, 1), "source batch must equal predict batch or be 1"

    L = C * H * W
    p_item = jnp.dtype(predict.dtype).itemsize
    s_item = jnp.dtype(source.dtype).itemsize
    itemsize = max(p_item, s_item)
    row_align = max(_row_align_for(predict.dtype), _row_align_for(source.dtype))

    pf = predict.reshape(N, L)      # bitcast reshapes, no copy
    sf = source.reshape(Ns, L)

    exact = _select_exact_tiling(L, itemsize, row_align, tile_bytes, max_lanes)
    if exact is not None:
        lanes, rows, block_rows = exact
        padded = False
    else:
        # TODO(synk): ragged L (no multiple-of-128 divisor) still takes a wrapper-side
        # pad + slice (extra HBM pass); an in-kernel iota tail mask would remove it.
        lanes, rows, block_rows = _select_padded_tiling(L, itemsize, row_align, tile_bytes)
        padded = True
        Lpad = rows * lanes
        pf = jnp.pad(pf, ((0, 0), (0, Lpad - L)), constant_values=0)   # pad -> num += 0
        sf = jnp.pad(sf, ((0, 0), (0, Lpad - L)), constant_values=1)   # pad -> masked out

    pf = pf.reshape(N, rows, lanes)
    sf = sf.reshape(Ns, rows, lanes)
    T = rows // block_rows

    # ---- VMEM budgeting (per TensorCore): pipeline buffers + optional p-cache. ----
    tile_elems = block_rows * lanes
    pipeline_bytes = 2 * tile_elems * (2 * p_item + s_item)   # pred, src, out (double-buffered)
    headroom = 2 << 20
    if vmem_cap_bytes is None:
        try:
            vmem_cap_bytes = int(getattr(pltpu.get_tpu_info(), "vmem_capacity_bytes",
                                         64 << 20))
        except Exception:
            vmem_cap_bytes = 64 << 20          # conservative (v7x per-core)
    cache_budget = int(vmem_cap_bytes * 0.85) - pipeline_bytes - headroom

    cache_dtype = None
    if use_p_cache is not False and T > 1:     # T == 1: predict block already stays resident
        if p_cache_dtype is not None:
            cd = jnp.dtype(p_cache_dtype)
            if rows * lanes * cd.itemsize <= cache_budget:
                cache_dtype = cd
        else:
            if rows * lanes * 4 <= cache_budget:
                cache_dtype = jnp.float32
            elif rows * lanes * 2 <= cache_budget:
                cache_dtype = jnp.bfloat16
    use_cache = cache_dtype is not None

    blk = (1, block_rows, lanes)
    last = T - 1
    # Freeze indices in the phase where the operand is not used so no DMAs are issued
    # (and unwritten output blocks are never flushed).
    if use_cache:
        pred_map = lambda n, ph, t: (n, t + ph * (last - t), 0)   # frozen in phase 1
    else:
        pred_map = lambda n, ph, t: (n, t, 0)                     # re-streamed in phase 1
    if Ns == N:
        src_map = lambda n, ph, t: (n, t + ph * (last - t), 0)    # frozen in phase 1
    else:
        src_map = lambda n, ph, t: (0, t + ph * (last - t), 0)
    out_map = lambda n, ph, t: (n, t * ph, 0)                     # frozen in phase 0

    scratch = [pltpu.VMEM((1, 1), jnp.float32),   # num accumulator
               pltpu.VMEM((1, 1), jnp.float32),   # den accumulator
               pltpu.VMEM((1, 1), jnp.float32)]   # scale (computed once per sample)
    if use_cache:
        scratch.append(pltpu.VMEM((T, block_rows, lanes), cache_dtype))
        kernel = _illum_kernel_cached
        cache_bytes = rows * lanes * jnp.dtype(cache_dtype).itemsize
    else:
        kernel = _illum_kernel_stream
        cache_bytes = 0

    need = pipeline_bytes + cache_bytes + (4 << 20)
    vmem_limit = int(min(max(need, 32 << 20), int(vmem_cap_bytes * 0.9)))

    # HBM traffic: read pred + read src + write out (+ re-read pred without cache).
    per_sample_bytes = rows * lanes * (2 * p_item + s_item + (0 if use_cache else p_item))
    cost = pl.CostEstimate(flops=int(6 * N * rows * lanes),
                           transcendentals=0,
                           bytes_accessed=int(N * per_sample_bytes))

    out = pl.pallas_call(
        kernel,
        out_shape=jax.ShapeDtypeStruct((N, rows, lanes), predict.dtype),
        grid=(N, 2, T),
        in_specs=[pl.BlockSpec(blk, pred_map),
                  pl.BlockSpec(blk, src_map)],
        out_specs=pl.BlockSpec(blk, out_map),
        scratch_shapes=scratch,
        compiler_params=pltpu.CompilerParams(
            dimension_semantics=("parallel", "arbitrary", "arbitrary"),
            vmem_limit_bytes=vmem_limit),
        cost_estimate=cost,
    )(pf, sf)

    out = out.reshape(N, rows * lanes)
    if padded:
        out = out[:, :L]
    return out.reshape(N, C, H, W)


# --------------------------------------------------------------------------- reference


def _reference(predict, source):
    # Pure-JAX reference mirroring the PyTorch semantics (per-sample).
    p = jnp.clip(predict.astype(jnp.float32), 0.0, 1.0)
    s = source.astype(jnp.float32)
    if s.shape[0] == 1 and p.shape[0] != 1:
        s = jnp.broadcast_to(s, p.shape)
    mask = s != 1.0
    num = jnp.sum(jnp.where(mask, p * s, 0.0), axis=(1, 2, 3), keepdims=True)
    den = jnp.sum(jnp.where(mask, p * p, 0.0), axis=(1, 2, 3), keepdims=True)
    return (num / den * p).astype(predict.dtype)


# -------------------------------------------------------------------------------- main


if __name__ == "__main__":
    key = jax.random.PRNGKey(0)
    k1, k2, k3, k4, k5, k6 = jax.random.split(key, 6)

    def make(kp, ks, shape):
        # predict deliberately spills outside [0, 1] to exercise the clamp; source gets
        # exact 1.0 entries so the `source != 1` mask is exercised.
        p = jax.random.uniform(kp, shape, jnp.float32, minval=-0.2, maxval=1.2)
        s = jax.random.uniform(ks, shape, jnp.float32, minval=0.0, maxval=2.0)
        s = s.at[:, :, ::4, ::4].set(1.0)
        return p, s

    # Case 1: small spec shape; exact (pad-free) tiling, single tile per sample.
    p1, s1 = make(k1, k2, (2, 4, 16, 16))
    o1 = jax.block_until_ready(illuminance_correct(p1, s1))
    r1 = _reference(p1, s1)
    assert o1.shape == p1.shape and o1.dtype == p1.dtype
    assert jnp.allclose(o1, r1, atol=1e-5, rtol=1e-4)

    # Broadcast path (source batch == 1).
    o1b = jax.block_until_ready(illuminance_correct(p1, s1[:1]))
    assert jnp.allclose(o1b, _reference(p1, s1[:1]), atol=1e-5, rtol=1e-4)

    # Case 2: force T > 1 with tiny tiles -> two-phase tiled reduction plus the
    # VMEM-resident f32 clip(p) cache (predict read from HBM only once per sample).
    p2, s2 = make(k3, k4, (2, 8, 32, 32))
    r2 = _reference(p2, s2)
    o2 = jax.block_until_ready(
        illuminance_correct(p2, s2, tile_bytes=4096, max_lanes=128))
    assert jnp.allclose(o2, r2, atol=1e-5, rtol=1e-4)

    # Case 2b: same, but force the bf16 cache (the v7x-sized-budget path).
    o2b = jax.block_until_ready(
        illuminance_correct(p2, s2, tile_bytes=4096, max_lanes=128,
                            p_cache_dtype=jnp.bfloat16))
    assert jnp.allclose(o2b, r2, atol=1e-2, rtol=1e-2)

    # Case 3: ragged L (not a multiple of 128) -> padded fallback, N == 1, and the
    # streaming (no-cache) multi-tile variant.
    p3, s3 = make(k5, k6, (1, 3, 20, 20))
    o3 = jax.block_until_ready(
        illuminance_correct(p3, s3, tile_bytes=4096, use_p_cache=False))
    assert jnp.allclose(o3, _reference(p3, s3), atol=1e-5, rtol=1e-4)

    print("KERNEL_OK")
</pallas_src>

<mosaic_0001>
module attributes {stable_mosaic.version = 11 : i64} {
  func.func @_illum_kernel_stream(%arg0: i32, %arg1: i32, %arg2: i32, %arg3: memref<1x1x1024xf32, #tpu.memory_space<vmem>>, %arg4: memref<1x1x1024xf32, #tpu.memory_space<vmem>>, %arg5: memref<1x1x1024xf32, #tpu.memory_space<vmem>>, %arg6: memref<1x1xf32, #tpu.memory_space<vmem>>, %arg7: memref<1x1xf32, #tpu.memory_space<vmem>>, %arg8: memref<1x1xf32, #tpu.memory_space<vmem>>) attributes {dimension_semantics = [#tpu.dimension_semantics<parallel>, #tpu.dimension_semantics<arbitrary>, #tpu.dimension_semantics<arbitrary>], iteration_bounds = array<i64: 2, 2, 1>, scalar_prefetch = 0 : i64, scratch_operands = 3 : i64, tpu.core_type = #tpu.core_type<tc>, window_params = [{transform_indices = @transform_0, window_bounds = array<i64: 1, 1, 1024>}, {transform_indices = @transform_1, window_bounds = array<i64: 1, 1, 1024>}, {transform_indices = @transform_2, window_bounds = array<i64: 1, 1, 1024>}]} {
    %c0_i32 = arith.constant 0 : i32
    %0 = arith.cmpi eq, %arg1, %c0_i32 : i32
    %c0_i32_0 = arith.constant 0 : i32
    %1 = arith.cmpi eq, %arg2, %c0_i32_0 : i32
    %2 = arith.andi %0, %1 : i1
    %3 = arith.extui %2 : i1 to i32
    %c0_i32_1 = arith.constant 0 : i32
    %4 = arith.cmpi ne, %3, %c0_i32_1 : i32
    scf.if %4 {
      %cst_11 = arith.constant 0.000000e+00 : f32
      %21 = vector.broadcast %cst_11 : f32 to vector<1x1xf32>
      %c0_12 = arith.constant 0 : index
      %c0_13 = arith.constant 0 : index
      %22 = vector.load %arg6[%c0_12, %c0_13] : memref<1x1xf32, #tpu.memory_space<vmem>>, vector<1x1xf32>
      tpu.vector_store %arg6[%c0_12, %c0_13], %21 {strides = array<i32>} : memref<1x1xf32, #tpu.memory_space<vmem>>, vector<1x1xf32>,
      %cst_14 = arith.constant 0.000000e+00 : f32
      %23 = vector.broadcast %cst_14 : f32 to vector<1x1xf32>
      %c0_15 = arith.constant 0 : index
      %c0_16 = arith.constant 0 : index
      %24 = vector.load %arg7[%c0_15, %c0_16] : memref<1x1xf32, #tpu.memory_space<vmem>>, vector<1x1xf32>
      tpu.vector_store %arg7[%c0_15, %c0_16], %23 {strides = array<i32>} : memref<1x1xf32, #tpu.memory_space<vmem>>, vector<1x1xf32>,
      %cst_17 = arith.constant 0.000000e+00 : f32
      %25 = vector.broadcast %cst_17 : f32 to vector<1x1x1024xf32>
      %c0_18 = arith.constant 0 : index
      %c0_19 = arith.constant 0 : index
      %c0_20 = arith.constant 0 : index
      %26 = vector.load %arg5[%c0_18, %c0_19, %c0_20] : memref<1x1x1024xf32, #tpu.memory_space<vmem>>, vector<1x1x1024xf32>
      tpu.vector_store %arg5[%c0_18, %c0_19, %c0_20], %25 {strides = array<i32>} : memref<1x1x1024xf32, #tpu.memory_space<vmem>>, vector<1x1x1024xf32>,
    } else {
    }
    %c0 = arith.constant 0 : index
    %c0_2 = arith.constant 0 : index
    %c0_3 = arith.constant 0 : index
    %5 = vector.load %arg3[%c0, %c0_2, %c0_3] : memref<1x1x1024xf32, #tpu.memory_space<vmem>>, vector<1x1x1024xf32>
    %cst = arith.constant 0.000000e+00 : f32
    %cst_4 = arith.constant 1.000000e+00 : f32
    %6 = vector.broadcast %cst : f32 to vector<1x1x1024xf32>
    %7 = arith.maximumf %6, %5 : vector<1x1x1024xf32>
    %8 = vector.broadcast %cst_4 : f32 to vector<1x1x1024xf32>
    %9 = arith.minimumf %8, %7 : vector<1x1x1024xf32>
    %c0_i32_5 = arith.constant 0 : i32
    %10 = arith.cmpi eq, %arg1, %c0_i32_5 : i32
    %11 = arith.extui %10 : i1 to i32
    %c0_i32_6 = arith.constant 0 : i32
    %12 = arith.cmpi ne, %11, %c0_i32_6 : i32
    scf.if %12 {
      %c0_11 = arith.constant 0 : index
      %c0_12 = arith.constant 0 : index
      %c0_13 = arith.constant 0 : index
      %21 = vector.load %arg4[%c0_11, %c0_12, %c0_13] : memref<1x1x1024xf32, #tpu.memory_space<vmem>>, vector<1x1x1024xf32>
      %cst_14 = arith.constant 1.000000e+00 : f32
      %22 = vector.broadcast %cst_14 : f32 to vector<1x1x1024xf32>
      %23 = arith.cmpf one, %21, %22 : vector<1x1x1024xf32>
      %cst_15 = arith.constant 0.000000e+00 : f32
      %24 = vector.broadcast %cst_15 : f32 to vector<1x1x1024xf32>
      %25 = arith.select %23, %9, %24 : vector<1x1x1024xi1>, vector<1x1x1024xf32>
      %c0_16 = arith.constant 0 : index
      %c0_17 = arith.constant 0 : index
      %26 = vector.load %arg6[%c0_16, %c0_17] : memref<1x1xf32, #tpu.memory_space<vmem>>, vector<1x1xf32>
      %27 = arith.mulf %25, %21 : vector<1x1x1024xf32>
      %28 = vector.shape_cast %27 : vector<1x1x1024xf32> to vector<1x1x1x1024xf32>
      %cst_18 = arith.constant dense<0.000000e+00> : vector<1xf32>
      %29 = vector.multi_reduction <add>, %28, %cst_18 [1, 2, 3] : vector<1x1x1x1024xf32> to vector<1xf32>
      %30 = vector.shape_cast %29 : vector<1xf32> to vector<1x1x1x1xf32>
      %31 = vector.extract %30[0, 0, 0, 0] : f32 from vector<1x1x1x1xf32>
      %32 = vector.broadcast %31 : f32 to vector<1x1xf32>
      %33 = arith.addf %26, %32 : vector<1x1xf32>
      %c0_19 = arith.constant 0 : index
      %c0_20 = arith.constant 0 : index
      %34 = vector.load %arg6[%c0_19, %c0_20] : memref<1x1xf32, #tpu.memory_space<vmem>>, vector<1x1xf32>
      tpu.vector_store %arg6[%c0_19, %c0_20], %33 {strides = array<i32>} : memref<1x1xf32, #tpu.memory_space<vmem>>, vector<1x1xf32>,
      %c0_21 = arith.constant 0 : index
      %c0_22 = arith.constant 0 : index
      %35 = vector.load %arg7[%c0_21, %c0_22] : memref<1x1xf32, #tpu.memory_space<vmem>>, vector<1x1xf32>
      %36 = arith.mulf %25, %9 : vector<1x1x1024xf32>
      %37 = vector.shape_cast %36 : vector<1x1x1024xf32> to vector<1x1x1x1024xf32>
      %cst_23 = arith.constant dense<0.000000e+00> : vector<1xf32>
      %38 = vector.multi_reduction <add>, %37, %cst_23 [1, 2, 3] : vector<1x1x1x1024xf32> to vector<1xf32>
      %39 = vector.shape_cast %38 : vector<1xf32> to vector<1x1x1x1xf32>
      %40 = vector.extract %39[0, 0, 0, 0] : f32 from vector<1x1x1x1xf32>
      %41 = vector.broadcast %40 : f32 to vector<1x1xf32>
      %42 = arith.addf %35, %41 : vector<1x1xf32>
      %c0_24 = arith.constant 0 : index
      %c0_25 = arith.constant 0 : index
      %43 = vector.load %arg7[%c0_24, %c0_25] : memref<1x1xf32, #tpu.memory_space<vmem>>, vector<1x1xf32>
      tpu.vector_store %arg7[%c0_24, %c0_25], %42 {strides = array<i32>} : memref<1x1xf32, #tpu.memory_space<vmem>>, vector<1x1xf32>,
    } else {
    }
    %c1_i32 = arith.constant 1 : i32
    %13 = arith.cmpi eq, %arg1, %c1_i32 : i32
    %c0_i32_7 = arith.constant 0 : i32
    %14 = arith.cmpi eq, %arg2, %c0_i32_7 : i32
    %15 = arith.andi %13, %14 : i1
    %16 = arith.extui %15 : i1 to i32
    %c0_i32_8 = arith.constant 0 : i32
    %17 = arith.cmpi ne, %16, %c0_i32_8 : i32
    scf.if %17 {
      %c0_11 = arith.constant 0 : index
      %c0_12 = arith.constant 0 : index
      %21 = vector.load %arg6[%c0_11, %c0_12] : memref<1x1xf32, #tpu.memory_space<vmem>>, vector<1x1xf32>
      %c0_13 = arith.constant 0 : index
      %c0_14 = arith.constant 0 : index
      %22 = vector.load %arg7[%c0_13, %c0_14] : memref<1x1xf32, #tpu.memory_space<vmem>>, vector<1x1xf32>
      %23 = arith.divf %21, %22 : vector<1x1xf32>
      %c0_15 = arith.constant 0 : index
      %c0_16 = arith.constant 0 : index
      %24 = vector.load %arg8[%c0_15, %c0_16] : memref<1x1xf32, #tpu.memory_space<vmem>>, vector<1x1xf32>
      tpu.vector_store %arg8[%c0_15, %c0_16], %23 {strides = array<i32>} : memref<1x1xf32, #tpu.memory_space<vmem>>, vector<1x1xf32>,
    } else {
    }
    %c1_i32_9 = arith.constant 1 : i32
    %18 = arith.cmpi eq, %arg1, %c1_i32_9 : i32
    %19 = arith.extui %18 : i1 to i32
    %c0_i32_10 = arith.constant 0 : i32
    %20 = arith.cmpi ne, %19, %c0_i32_10 : i32
    scf.if %20 {
      %c0_11 = arith.constant 0 : index
      %c0_12 = arith.constant 0 : index
      %21 = vector.load %arg8[%c0_11, %c0_12] : memref<1x1xf32, #tpu.memory_space<vmem>>, vector<1x1xf32>
      %22 = vector.shape_cast %21 : vector<1x1xf32> to vector<1x1x1xf32>
      %23 = vector.broadcast %22 : vector<1x1x1xf32> to vector<1x1x1024xf32>
      %24 = arith.mulf %23, %9 : vector<1x1x1024xf32>
      %c0_13 = arith.constant 0 : index
      %c0_14 = arith.constant 0 : index
      %c0_15 = arith.constant 0 : index
      %25 = vector.load %arg5[%c0_13, %c0_14, %c0_15] : memref<1x1x1024xf32, #tpu.memory_space<vmem>>, vector<1x1x1024xf32>
      tpu.vector_store %arg5[%c0_13, %c0_14, %c0_15], %24 {strides = array<i32>} : memref<1x1x1024xf32, #tpu.memory_space<vmem>>, vector<1x1x1024xf32>,
    } else {
    }
    return
  }
  func.func @transform_0(%arg0: i32, %arg1: i32, %arg2: i32) -> (i32, i32, i32) {
    %c0_i32 = arith.constant 0 : i32
    %c0_i32_0 = arith.constant 0 : i32
    return %arg0, %arg2, %c0_i32 : i32, i32, i32
  }
  func.func @transform_1(%arg0: i32, %arg1: i32, %arg2: i32) -> (i32, i32, i32) {
    %c0_i32 = arith.constant 0 : i32
    %0 = arith.subi %c0_i32, %arg2 : i32
    %1 = arith.muli %arg1, %0 : i32
    %2 = arith.addi %arg2, %1 : i32
    %c0_i32_0 = arith.constant 0 : i32
    %c0_i32_1 = arith.constant 0 : i32
    return %arg0, %2, %c0_i32_0 : i32, i32, i32
  }
  func.func @transform_2(%arg0: i32, %arg1: i32, %arg2: i32) -> (i32, i32, i32) {
    %0 = arith.muli %arg2, %arg1 : i32
    %c0_i32 = arith.constant 0 : i32
    %c0_i32_0 = arith.constant 0 : i32
    return %arg0, %0, %c0_i32 : i32, i32, i32
  }
}

</mosaic_0001>

<llo_original>
// kernel: tpu_custom_call.1
$region0: #{tpu_custom_call.1}
  #allocation0 [shape = 'u32[]', space=smem, size = 0x4, offset = 0x4, fixed_abs, tag = 'smem constant byte address 0x4 - core index']
  #allocation1 [shape = 'u32[144,128]{1,0:T(1,128)}', space=vmem, size = 0x12000, scoped, tag = 'internal scratch']
  #allocation2 [shape = 'f32[1,1]{1,0:T(1,128)}', space=vmem, size = 0x200, scoped, tag = 'scratch operand']
  #allocation3 [shape = 'f32[1,1]{1,0:T(1,128)}', space=vmem, size = 0x200, scoped, tag = 'scratch operand']
  #allocation4 [shape = 'f32[1,1]{1,0:T(1,128)}', space=vmem, size = 0x200, scoped, tag = 'scratch operand']
  %s0 = inlined_call_operand.hbm [shape: f32[2,1,1024], index: 0, kind: input, shape index: {}]
  %s1 = inlined_call_operand.hbm [shape: f32[2,1,1024], index: 1, kind: input, shape index: {}]
  %s2 = inlined_call_operand.hbm [shape: f32[2,1,1024], index: 2, kind: output, shape index: {}]
  %s3 = sld [smem:[#allocation0]]
  $region65: #{tpu_custom_call.1} parent=0
    _
  %s5 = ssub.s32 1, %s3
  %s6 = scalar_select 0, %s5, %s3
  $region1: #{tpu_custom_call.1} parent=0
    #allocation5 [shape = 'u8[8192]{0}', space=vmem, size = 0x2000, scoped, tag = 'input window, operand 0']
    #allocation6 [shape = 's32[2]{0}', space=sflag, size = 0x8, scoped, tag = 'scoped memory for tpu_custom_call.1']
    #allocation7 [shape = 's32[2]{0}', space=sflag, size = 0x8, scoped, tag = 'scoped memory for tpu_custom_call.1']
    #allocation8 [shape = 'u8[8192]{0}', space=vmem, size = 0x2000, scoped, tag = 'input window, operand 1']
    #allocation9 [shape = 's32[2]{0}', space=sflag, size = 0x8, scoped, tag = 'scoped memory for tpu_custom_call.1']
    #allocation10 [shape = 'u8[8192]{0}', space=vmem, size = 0x2000, scoped, tag = 'output window, operand 0']
    %7 = vsyncpa [#allocation6], 0
    %s8 = scalar_lea.sflag [#allocation6], 1
    %9 = vsyncpa %s8, 0
    %10 = vsyncpa [#allocation9], 0
    %s11 = scalar_lea.sflag [#allocation9], 1
    %12 = vsyncpa %s11, 0
    %13 = vsyncpa [#allocation7], 0
    %s14 = scalar_lea.sflag [#allocation7], 1
    %15 = vsyncpa %s14, 0
    loop: start=0, step=1, limit=6
    $region2: #{tpu_custom_call.1} parent=1 // loop_pre_header
      _
    $region3: #{tpu_custom_call.1} parent=1 // loop_header
      %s17 = sphi 0, %s21
      %p18 = scmp.ge.s32.totalorder %s17, 6
      %s24 = sphi 0, %s43
      %s25 = sphi 0, %s39
      %s26 = sphi 0, %s35
      %s27 = sphi 0, %s24
      %s28 = sphi 0, %s25
      %s29 = sphi 0, %s26
      %s30 = sphi 0, %s27
      %s31 = sphi 0, %s28
      %s32 = sphi 0, %s29
      %s48 = sphi 0, %s50
      %s51 = sphi 0, %s48
      %s52 = sphi 0, %s51
      %s68 = sphi 0, %s52
      %s82 = sphi 0, %s84
      %s85 = sphi 0, %s82
      %s86 = sphi 0, %s85
      %s102 = sphi 0, %s86
      %s112 = sphi 0, %s114
      %s115 = sphi 0, %s112
      %s116 = sphi 0, %s115
      %s132 = sphi 0, %s116
    $region4: #{tpu_custom_call.1} parent=1 // loop_header_branch
      %20 = sbr.rel (%p18) target = $region8
    $region5: #{tpu_custom_call.1} parent=1 // loop_body
      %s22 = ssub.s32 %s17, 1
      %s23 = ssub.s32 %s17, 2
      %s33 = sadd.s32 1, %s26
      %p34 = scmp.ge.s32.totalorder %s33, 1
      %s35 = scalar_select %p34, 0, %s33
      %s36 = sadd.s32 1, %s25
      %s37 = scalar_select %p34, %s36, %s25
      %p38 = scmp.ge.s32.totalorder %s37, 2
      %s39 = scalar_select %p38, 0, %s37
      %s40 = sadd.s32 1, %s24
      %s41 = scalar_select %p38, %s40, %s24
      %p42 = scmp.ge.s32.totalorder %s41, 2
      %s43 = scalar_select %p42, 0, %s41
      %s44 = ssub.s32 %s24, %s43
      %s45 = ssub.s32 %s26, %s35
      %s46 = sor.u32 %s44, %s45
      %p47 = scmp.eq.s32.totalorder %s46, 0
      %s49 = sadd.s32 %s48, 1
      %s50 = scalar_select %p47, %s48, %s49
      %p53 = pneg %p47
      %p54 = scmp.eq.s32.totalorder %s17, 3
      %p55 = por %p53, %p54
      %p56 = scmp.ne.s32.totalorder %s48, %s51
      %p57 = scmp.eq.s32.totalorder %s17, 0
      %p58 = por %p56, %p57
      %p59 = scmp.ne.s32.totalorder %s48, %s51
      %p60 = scmp.eq.s32.totalorder %s22, 3
      %p61 = por %p59, %p60
      %p62 = scmp.ne.s32.totalorder %s51, %s52
      %p63 = scmp.eq.s32.totalorder %s22, 0
      %p64 = por %p62, %p63
      %p65 = scmp.ne.s32.totalorder %s51, %s52
      %p66 = scmp.eq.s32.totalorder %s23, 3
      %p67 = por %p65, %p66
      %p69 = scmp.ne.s32.totalorder %s52, %s68
      %p70 = scmp.eq.s32.totalorder %s23, 0
      %p71 = por %p69, %p70
      %s72 = ssub.s32 0, %s26
      %s73 = smul.u32 %s25, %s72
      %s74 = sadd.s32 %s26, %s73
      %s75 = ssub.s32 0, %s35
      %s76 = smul.u32 %s39, %s75
      %s77 = sadd.s32 %s35, %s76
      %s78 = ssub.s32 %s24, %s43
      %s79 = ssub.s32 %s74, %s77
      %s80 = sor.u32 %s78, %s79
      %p81 = scmp.eq.s32.totalorder %s80, 0
      %s83 = sadd.s32 %s82, 1
      %s84 = scalar_select %p81, %s82, %s83
      %p87 = pneg %p81
      %p88 = scmp.eq.s32.totalorder %s17, 3
      %p89 = por %p87, %p88
      %p90 = scmp.ne.s32.totalorder %s82, %s85
      %p91 = scmp.eq.s32.totalorder %s17, 0
      %p92 = por %p90, %p91
      %p93 = scmp.ne.s32.totalorder %s82, %s85
      %p94 = scmp.eq.s32.totalorder %s22, 3
      %p95 = por %p93, %p94
      %p96 = scmp.ne.s32.totalorder %s85, %s86
      %p97 = scmp.eq.s32.totalorder %s22, 0
      %p98 = por %p96, %p97
      %p99 = scmp.ne.s32.totalorder %s85, %s86
      %p100 = scmp.eq.s32.totalorder %s23, 3
      %p101 = por %p99, %p100
      %p103 = scmp.ne.s32.totalorder %s86, %s102
      %p104 = scmp.eq.s32.totalorder %s23, 0
      %p105 = por %p103, %p104
      %s106 = smul.u32 %s26, %s25
      %s107 = smul.u32 %s35, %s39
      %s108 = ssub.s32 %s24, %s43
      %s109 = ssub.s32 %s106, %s107
      %s110 = sor.u32 %s108, %s109
      %p111 = scmp.eq.s32.totalorder %s110, 0
      %s113 = sadd.s32 %s112, 1
      %s114 = scalar_select %p111, %s112, %s113
      %p117 = pneg %p111
      %p118 = scmp.eq.s32.totalorder %s17, 3
      %p119 = por %p117, %p118
      %p120 = scmp.ne.s32.totalorder %s112, %s115
      %p121 = scmp.eq.s32.totalorder %s17, 0
      %p122 = por %p120, %p121
      %p123 = scmp.ne.s32.totalorder %s112, %s115
      %p124 = scmp.eq.s32.totalorder %s22, 3
      %p125 = por %p123, %p124
      %p126 = scmp.ne.s32.totalorder %s115, %s116
      %p127 = scmp.eq.s32.totalorder %s22, 0
      %p128 = por %p126, %p127
      %p129 = scmp.ne.s32.totalorder %s115, %s116
      %p130 = scmp.eq.s32.totalorder %s23, 3
      %p131 = por %p129, %p130
      %p133 = scmp.ne.s32.totalorder %s116, %s132
      %p134 = scmp.eq.s32.totalorder %s23, 0
      %p135 = por %p133, %p134
      %p136 = scmp.le.s32.totalorder 1, %s17
      %p137 = scmp.lt.s32.totalorder %s17, 5
      %p138 = pnand %p136, %p137
      %p139 = pneg %p138
      // Predicated region
      $region9: #{tpu_custom_call.1} parent=5 // pred_check
        _
      $region10: #{tpu_custom_call.1} parent=5 // pred_check_branch
        %141 = sbr.rel (%p138) target = $region12
      $region11: #{tpu_custom_call.1} parent=5 // pred_region
        %s142 = ssub.s32 %s17, 1
      $region12: #{tpu_custom_call.1} parent=5 // pred_fallthru
        _
      %p143 = scmp.lt.s32.totalorder %s17, 4
      // Predicated region
      $region13: #{tpu_custom_call.1} parent=5 // pred_check
        %p144 = pneg %p143
      $region14: #{tpu_custom_call.1} parent=5 // pred_check_branch
        %146 = sbr.rel (%p144) target = $region16
      $region15: #{tpu_custom_call.1} parent=5 // pred_region
        // Predicated region
        $region17: #{tpu_custom_call.1} parent=15 // pred_check
          %p147 = pneg %p58
        $region18: #{tpu_custom_call.1} parent=15 // pred_check_branch
          %149 = sbr.rel (%p147) target = $region20
        $region19: #{tpu_custom_call.1} parent=15 // pred_region
          %s150 = sand.u32 %s48, 1
          %s151 = scalar_lea.sflag [#allocation6], %s150
          %s152 = sand.u32 %s48, 1
          %s153 = smul.addr %s152, 8
          %s154 = scalar_lea.vmem [#allocation5], %s153
          %s156 = ssub.s32 128, 128
          %157 = vsyncadd %s151, %s156
          %s158 = smul.addr %s26, 8
          %s159 = smul.addr %s24, 8
          %s160 = sadd.s32 %s158, %s159
          %s161 = smul.addr %s160, 16
          %s162 = scalar_lea.hbm %s0, %s161
          %s164 = sshll.u32 %s154, 4
          %s165 = int_to_ptr.vmem [resolvable:$true] %s164
          %167 = dma.hbm_to_vmem [thread:$0]  %s162, 128, %s165, %s151
        $region20: #{tpu_custom_call.1} parent=15 // pred_fallthru
          _
        // Predicated region
        $region21: #{tpu_custom_call.1} parent=15 // pred_check
          %p168 = pneg %p92
        $region22: #{tpu_custom_call.1} parent=15 // pred_check_branch
          %170 = sbr.rel (%p168) target = $region24
        $region23: #{tpu_custom_call.1} parent=15 // pred_region
          %s171 = sand.u32 %s82, 1
          %s172 = scalar_lea.sflag [#allocation9], %s171
          %s173 = sand.u32 %s82, 1
          %s174 = smul.addr %s173, 8
          %s175 = scalar_lea.vmem [#allocation8], %s174
          %s176 = ssub.s32 0, %s26
          %s177 = smul.u32 %s25, %s176
          %s178 = sadd.s32 %s26, %s177
          %s180 = ssub.s32 128, 128
          %181 = vsyncadd %s172, %s180
          %s182 = smul.addr %s178, 8
          %s183 = smul.addr %s24, 8
          %s184 = sadd.s32 %s182, %s183
          %s185 = smul.addr %s184, 16
          %s186 = scalar_lea.hbm %s1, %s185
          %s188 = sshll.u32 %s175, 4
          %s189 = int_to_ptr.vmem [resolvable:$true] %s188
          %191 = dma.hbm_to_vmem [thread:$0]  %s186, 128, %s189, %s172
        $region24: #{tpu_custom_call.1} parent=15 // pred_fallthru
          _
      $region16: #{tpu_custom_call.1} parent=5 // pred_fallthru
        _
      %p192 = scmp.le.s32.totalorder 1, %s17
      %p193 = scmp.lt.s32.totalorder %s17, 5
      %p194 = pnand %p192, %p193
      %p195 = pneg %p194
      // Predicated region
      $region25: #{tpu_custom_call.1} parent=5 // pred_check
        _
      $region26: #{tpu_custom_call.1} parent=5 // pred_check_branch
        %197 = sbr.rel (%p194) target = $region28
      $region27: #{tpu_custom_call.1} parent=5 // pred_region
        %s198 = ssub.s32 %s17, 1
        %s199 = sand.u32 %s51, 1
        %s200 = scalar_lea.sflag [#allocation6], %s199
        %s201 = sand.u32 %s51, 1
        %s202 = smul.addr %s201, 8
        %s203 = scalar_lea.vmem [#allocation5], %s202
        // Predicated region
        $region29: #{tpu_custom_call.1} parent=27 // pred_check
          %p204 = pneg %p64
        $region30: #{tpu_custom_call.1} parent=27 // pred_check_branch
          %206 = sbr.rel (%p204) target = $region32
        $region31: #{tpu_custom_call.1} parent=27 // pred_region
          %207 = dma.done %s200, 128
        $region32: #{tpu_custom_call.1} parent=27 // pred_fallthru
          _
        %s208 = sand.u32 %s85, 1
        %s209 = scalar_lea.sflag [#allocation9], %s208
        %s210 = sand.u32 %s85, 1
        %s211 = smul.addr %s210, 8
        %s212 = scalar_lea.vmem [#allocation8], %s211
        // Predicated region
        $region33: #{tpu_custom_call.1} parent=27 // pred_check
          %p213 = pneg %p98
        $region34: #{tpu_custom_call.1} parent=27 // pred_check_branch
          %215 = sbr.rel (%p213) target = $region36
        $region35: #{tpu_custom_call.1} parent=27 // pred_region
          %216 = dma.done %s209, 128
        $region36: #{tpu_custom_call.1} parent=27 // pred_fallthru
          _
        %s217 = sand.u32 %s51, 1
        %s218 = scalar_lea.sflag [#allocation6], %s217
        %s219 = sand.u32 %s51, 1
        %s220 = smul.addr %s219, 8
        %s221 = scalar_lea.vmem [#allocation5], %s220
        %p222 = pneg %p64
        %p223 = pneg %p61
        %s224 = sand.u32 %s85, 1
        %s225 = scalar_lea.sflag [#allocation9], %s224
        %s226 = sand.u32 %s85, 1
        %s227 = smul.addr %s226, 8
        %s228 = scalar_lea.vmem [#allocation8], %s227
        %p229 = pneg %p98
        %p230 = pneg %p95
        %p231 = pneg %p128
        %p232 = pneg %p125
        %s233 = sand.u32 %s115, 1
        %s234 = scalar_lea.sflag [#allocation7], %s233
        %s235 = sand.u32 %s115, 1
        %s236 = smul.addr %s235, 8
        %s237 = scalar_lea.vmem [#allocation10], %s236
        %s238 = ssub.s32 0, %s29
        %s239 = smul.u32 %s28, %s238
        %s240 = sadd.s32 %s29, %s239
        %s241 = smul.u32 %s29, %s28
        %p242 = scmp.eq.s32.totalorder %s28, 0
        %p243 = scmp.eq.s32.totalorder %s29, 0
        %p244 = pnand %p242, %p243
        %p245 = pneg %p244
        // Predicated region
        $region37: #{tpu_custom_call.1} parent=27 // pred_check
          _
        $region38: #{tpu_custom_call.1} parent=27 // pred_check_branch
          %247 = sbr.rel (%p244) target = $region40
        $region39: #{tpu_custom_call.1} parent=27 // pred_region
          %vm248 = vcmask 0
          %249 = vst.msk [vmem:[#allocation2] sm:$0x1] %vm248, 0.0
          %250 = vst.msk [vmem:[#allocation3] sm:$0x1] %vm248, 0.0
          %251 = vst [vmem:[%s237] sm:$0xff] 0.0
        $region40: #{tpu_custom_call.1} parent=27 // pred_fallthru
          _
        %v252 = vld [vmem:[%s203] sm:$0xff]
        %v253 = vmax.f32 %v252, 0.0
        %v254 = vmin.f32 %v253, 1.0
        // Predicated region
        $region41: #{tpu_custom_call.1} parent=27 // pred_check
          %p255 = pneg %p242
        $region42: #{tpu_custom_call.1} parent=27 // pred_check_branch
          %257 = sbr.rel (%p255) target = $region44
        $region43: #{tpu_custom_call.1} parent=27 // pred_region
          %v258 = vld [vmem:[%s212] sm:$0xff]
          %vm259 = vcmp.ne.f32.partialorder %v258, 1.0
          %v260 = vsel %vm259, %v254, 0.0
          %v261 = vld [vmem:[#allocation2] sm:$0x1]
          %v262 = vmul.f32 %v260, %v258
          %v264 = vlaneseq
          %v265 = vshrl.u32 %v264, 7
          %v266 = vsub.s32 0, %v265
          %v267 = vrot.slane %v262, %v266
          %v268 = vlaneseq
          %v269 = vshrl.u32 %v268, 7
          %v270 = vsub.s32 1, %v269
          %v271 = vrot.slane %v262, %v270
          %v272 = vlaneseq
          %v273 = vshrl.u32 %v272, 7
          %v274 = vsub.s32 2, %v273
          %v275 = vrot.slane %v262, %v274
          %v276 = vlaneseq
          %v277 = vshrl.u32 %v276, 7
          %v278 = vsub.s32 3, %v277
          %v279 = vrot.slane %v262, %v278
          %v280 = vlaneseq
          %v281 = vshrl.u32 %v280, 7
          %v282 = vsub.s32 4, %v281
          %v283 = vrot.slane %v262, %v282
          %v284 = vlaneseq
          %v285 = vshrl.u32 %v284, 7
          %v286 = vsub.s32 5, %v285
          %v287 = vrot.slane %v262, %v286
          %v288 = vlaneseq
          %v289 = vshrl.u32 %v288, 7
          %v290 = vsub.s32 6, %v289
          %v291 = vrot.slane %v262, %v290
          %v292 = vlaneseq
          %v293 = vshrl.u32 %v292, 7
          %v294 = vsub.s32 7, %v293
          %v295 = vrot.slane %v262, %v294
          %vm304 = vcmask 1040384
          %v305 = vsel %vm304, %v267, 0.0
          %v306 = vsel %vm304, %v271, 0.0
          %v307 = vadd.f32 %v305, %v306
          %v308 = vsel %vm304, %v275, 0.0
          %v309 = vadd.f32 %v307, %v308
          %v310 = vsel %vm304, %v279, 0.0
          %v311 = vadd.f32 %v309, %v310
          %v312 = vsel %vm304, %v283, 0.0
          %v313 = vadd.f32 %v311, %v312
          %v314 = vsel %vm304, %v287, 0.0
          %v315 = vadd.f32 %v313, %v314
          %v316 = vsel %vm304, %v291, 0.0
          %v317 = vadd.f32 %v315, %v316
          %v318 = vsel %vm304, %v295, 0.0
          %v319 = vadd.f32 %v317, %v318
          %320 = vadd.xlane.f32.xlu0 %v319
          %v321 = vpop.xlane.xlu0 %320
          %v322 = vrot.slane %v321, 4
          %v323 = vadd.f32 %v321, %v322
          %v324 = vrot.slane %v323, 2
          %v325 = vadd.f32 %v323, %v324
          %v326 = vrot.slane %v325, 1
          %v327 = vadd.f32 %v325, %v326
          %s328 = vtos %v327
          %v329 = vstv %s328
          %v330 = vadd.f32 %v261, %v329
          %vm331 = vcmask 0
          %332 = vst.msk [vmem:[#allocation2] sm:$0x1] %vm331, %v330
          %v333 = vld [vmem:[#allocation3] sm:$0x1]
          %v334 = vmul.f32 %v260, %v254
          %v336 = vlaneseq
          %v337 = vshrl.u32 %v336, 7
          %v338 = vsub.s32 0, %v337
          %v339 = vrot.slane %v334, %v338
          %v340 = vlaneseq
          %v341 = vshrl.u32 %v340, 7
          %v342 = vsub.s32 1, %v341
          %v343 = vrot.slane %v334, %v342
          %v344 = vlaneseq
          %v345 = vshrl.u32 %v344, 7
          %v346 = vsub.s32 2, %v345
          %v347 = vrot.slane %v334, %v346
          %v348 = vlaneseq
          %v349 = vshrl.u32 %v348, 7
          %v350 = vsub.s32 3, %v349
          %v351 = vrot.slane %v334, %v350
          %v352 = vlaneseq
          %v353 = vshrl.u32 %v352, 7
          %v354 = vsub.s32 4, %v353
          %v355 = vrot.slane %v334, %v354
          %v356 = vlaneseq
          %v357 = vshrl.u32 %v356, 7
          %v358 = vsub.s32 5, %v357
          %v359 = vrot.slane %v334, %v358
          %v360 = vlaneseq
          %v361 = vshrl.u32 %v360, 7
          %v362 = vsub.s32 6, %v361
          %v363 = vrot.slane %v334, %v362
          %v364 = vlaneseq
          %v365 = vshrl.u32 %v364, 7
          %v366 = vsub.s32 7, %v365
          %v367 = vrot.slane %v334, %v366
          %v376 = vsel %vm304, %v339, 0.0
          %v377 = vsel %vm304, %v343, 0.0
          %v378 = vadd.f32 %v376, %v377
          %v379 = vsel %vm304, %v347, 0.0
          %v380 = vadd.f32 %v378, %v379
          %v381 = vsel %vm304, %v351, 0.0
          %v382 = vadd.f32 %v380, %v381
          %v383 = vsel %vm304, %v355, 0.0
          %v384 = vadd.f32 %v382, %v383
          %v385 = vsel %vm304, %v359, 0.0
          %v386 = vadd.f32 %v384, %v385
          %v387 = vsel %vm304, %v363, 0.0
          %v388 = vadd.f32 %v386, %v387
          %v389 = vsel %vm304, %v367, 0.0
          %v390 = vadd.f32 %v388, %v389
          %391 = vadd.xlane.f32.xlu0 %v390
          %v392 = vpop.xlane.xlu0 %391
          %v393 = vrot.slane %v392, 4
          %v394 = vadd.f32 %v392, %v393
          %v395 = vrot.slane %v394, 2
          %v396 = vadd.f32 %v394, %v395
          %v397 = vrot.slane %v396, 1
          %v398 = vadd.f32 %v396, %v397
          %s399 = vtos %v398
          %v400 = vstv %s399
          %v401 = vadd.f32 %v333, %v400
          %402 = vst.msk [vmem:[#allocation3] sm:$0x1] %vm331, %v401
        $region44: #{tpu_custom_call.1} parent=27 // pred_fallthru
          _
        %p403 = scmp.eq.s32.totalorder %s28, 1
        %p404 = pnand %p403, %p243
        %p405 = pneg %p404
        // Predicated region
        $region45: #{tpu_custom_call.1} parent=27 // pred_check
          _
        $region46: #{tpu_custom_call.1} parent=27 // pred_check_branch
          %407 = sbr.rel (%p404) target = $region48
        $region47: #{tpu_custom_call.1} parent=27 // pred_region
          %v408 = vld [vmem:[#allocation2] sm:$0x1]
          %v409 = vld [vmem:[#allocation3] sm:$0x1]
          %v410 = vrcp.pop %v409
          %v411 = vmul.f32 %v408, %v410
          %vm412 = vcmask 0
          %413 = vst.msk [vmem:[#allocation4] sm:$0x1] %vm412, %v411
        $region48: #{tpu_custom_call.1} parent=27 // pred_fallthru
          _
        // Predicated region
        $region49: #{tpu_custom_call.1} parent=27 // pred_check
          %p414 = pneg %p403
        $region50: #{tpu_custom_call.1} parent=27 // pred_check_branch
          %416 = sbr.rel (%p414) target = $region52
        $region51: #{tpu_custom_call.1} parent=27 // pred_region
          %v417 = vld [vmem:[#allocation4] sm:$0x1]
          %419 = vset.pattern.permute.xlu0 0
          %420 = vperm.xlu0 %419, %v417
          %v421 = vpop.permute.xlu0 %420
          %v423 = vlaneseq
          %v424 = vshrl.u32 %v423, 7
          %v425 = vsub.s32 0, %v424
          %v426 = vrot.slane %v421, %v425
          %v427 = vmul.f32 %v426, %v254
          %428 = vst [vmem:[%s237] sm:$0xff] %v427
        $region52: #{tpu_custom_call.1} parent=27 // pred_fallthru
          _
        %s429 = sand.u32 %s115, 1
        %s430 = scalar_lea.sflag [#allocation7], %s429
        %s431 = sand.u32 %s115, 1
        %s432 = smul.addr %s431, 8
        %s433 = scalar_lea.vmem [#allocation10], %s432
        // Predicated region
        $region53: #{tpu_custom_call.1} parent=27 // pred_check
          %p434 = pneg %p125
        $region54: #{tpu_custom_call.1} parent=27 // pred_check_branch
          %436 = sbr.rel (%p434) target = $region56
        $region55: #{tpu_custom_call.1} parent=27 // pred_region
          %s437 = smul.u32 %s29, %s28
          %s439 = ssub.s32 128, 128
          %440 = vsyncadd %s430, %s439
          %s441 = smul.addr %s437, 8
          %s442 = smul.addr %s27, 8
          %s443 = sadd.s32 %s441, %s442
          %s444 = smul.addr %s443, 16
          %s445 = scalar_lea.hbm %s2, %s444
          %s447 = sshll.u32 %s433, 4
          %s448 = int_to_ptr.vmem [resolvable:$true] %s447
          %450 = dma.vmem_to_hbm [thread:$0]  %s448, 128, %s445, %s430
        $region56: #{tpu_custom_call.1} parent=27 // pred_fallthru
          _
      $region28: #{tpu_custom_call.1} parent=5 // pred_fallthru
        _
      %p451 = scmp.le.s32.totalorder 2, %s17
      // Predicated region
      $region57: #{tpu_custom_call.1} parent=5 // pred_check
        %p452 = pneg %p451
      $region58: #{tpu_custom_call.1} parent=5 // pred_check_branch
        %454 = sbr.rel (%p452) target = $region60
      $region59: #{tpu_custom_call.1} parent=5 // pred_region
        %s455 = ssub.s32 %s17, 2
        // Predicated region
        $region61: #{tpu_custom_call.1} parent=59 // pred_check
          %p456 = pneg %p131
        $region62: #{tpu_custom_call.1} parent=59 // pred_check_branch
          %458 = sbr.rel (%p456) target = $region64
        $region63: #{tpu_custom_call.1} parent=59 // pred_region
          %s459 = sand.u32 %s116, 1
          %s460 = scalar_lea.sflag [#allocation7], %s459
          %s461 = sand.u32 %s116, 1
          %s462 = smul.addr %s461, 8
          %s463 = scalar_lea.vmem [#allocation10], %s462
          %464 = dma.done %s460, 128
        $region64: #{tpu_custom_call.1} parent=59 // pred_fallthru
          _
      $region60: #{tpu_custom_call.1} parent=5 // pred_fallthru
        _
    $region6: #{tpu_custom_call.1} parent=1 // loop_footer
      %s21 = sadd.s32 1, %s17
    $region7: #{tpu_custom_call.1} parent=1 // loop_footer_branch
      %16 = sbr.rel target = $region3
    $region8: #{tpu_custom_call.1} parent=1 // loop_exit
      _
    %465 = vsyncpa [#allocation6], 1
    %s466 = scalar_lea.sflag [#allocation6], 1
    %467 = vsyncpa %s466, 1
    %468 = vsyncpa [#allocation9], 1
    %s469 = scalar_lea.sflag [#allocation9], 1
    %470 = vsyncpa %s469, 1
    %471 = vsyncpa [#allocation7], 1
    %s472 = scalar_lea.sflag [#allocation7], 1
    %473 = vsyncpa %s472, 1

</llo_original>
